<compile_context>
chip_gen: v7x
topology: tpu7x:2x2x1
jax: 0.10.0
libtpu: 0.0.40
codegen_flags: <defaults>
</compile_context>

<pallas_src>
import jax
import jax.numpy as jnp
from jax.experimental import pallas as pl
from jax.experimental.pallas import tpu as pltpu

# ---------------- problem sizes (small, deterministic) ----------------
N = 16            # total nodes
G = 2             # graphs in batch
H = 32            # hidden_size
OUT = 16          # out_dim
NUM_LAYERS = 3
NUM_ATOM_FEATS = 9
ATOM_TABLE = 16
DEG_TABLE = 64
ALPHA = 0.8
K_APPNP = 5
BN_EPS = 1e-5
L1 = NUM_LAYERS - 1    # conv layers that carry ReLU + virtual-node update


# ---------------- pallas_call plumbing ----------------
def _full_spec(shape):
    ndim = len(shape)
    return pl.BlockSpec(shape, lambda i, _n=ndim: (0,) * _n)


# ---------------- the single fused kernel (entire hot path) ----------------
def fused_forward_kernel(x_ref, a_ref, side_ref, convw_ref, vw1_ref, vw2_ref,
                         bias_ref, wout_ref, bout_ref, o_ref):
    """GNN layers + vnode updates + folded (conv+APPNP+pool+Linear) tail.

    h [N,H] and vn [G,H] live entirely on-chip across the static layer unroll;
    only the final [G,OUT] result is stored.  Eval-BN is pre-folded on host.
    """
    f32 = jnp.float32
    bf16 = jnp.bfloat16

    h = x_ref[...]                       # [N, H]  f32 node features
    a = a_ref[...]                       # [N, N]  bf16 normalized adjacency
    side = side_ref[...]                 # [N, 2G] f32: cols [0:G)=sel, [G:2G)=R^T

    # --- packed-bias static slices (single [3*L1, 128] lane-padded buffer) ---
    def conv_bias(i):
        return bias_ref[i:i + 1, :H]                       # [1, H]

    def vn_bias1(j):
        return bias_ref[L1 + j:L1 + j + 1, :2 * H]         # [1, 2H]

    def vn_bias2(j):
        return bias_ref[2 * L1 + j:2 * L1 + j + 1, :H]     # [1, H]

    # --- VPU-only assembly of G single rows into a [G, width] matrix ---
    def rows_to_mat(rows, width):
        rid = jax.lax.broadcasted_iota(jnp.int32, (G, width), 0)
        out = jnp.zeros((G, width), f32)
        for g, r in enumerate(rows):
            out = out + jnp.where(rid == g, r, 0.0)
        return out

    # --- GCN-style conv with folded eval-BN (bf16 MXU operands, f32 acc) ---
    def conv(h_in, i):
        xw = jnp.dot(h_in.astype(bf16), convw_ref[i], preferred_element_type=f32)
        return jnp.dot(a, xw.astype(bf16), preferred_element_type=f32) + conv_bias(i)

    # --- global_add_pool as G masked sublane reductions (no MXU) ---
    def add_pool(h_in):
        return rows_to_mat(
            [jnp.sum(h_in * side[:, g:g + 1], axis=0, keepdims=True) for g in range(G)],
            H)

    # --- virtual-node MLP: Linear->foldedBN->ReLU->Linear->foldedBN->ReLU ---
    def vn_mlp(vt, j):
        z = jnp.dot(vt.astype(bf16), vw1_ref[j], preferred_element_type=f32) + vn_bias1(j)
        z = jnp.maximum(z, 0.0)
        z = jnp.dot(z.astype(bf16), vw2_ref[j], preferred_element_type=f32) + vn_bias2(j)
        return jnp.maximum(z, 0.0)

    # ---- layer 0, peeled: vn == 0 so the sel@vn broadcast and '+vn' vanish ----
    h = jnp.maximum(conv(h, 0), 0.0)                  # ReLU; dropout(eval)=identity
    # NOTE: (0 - 1) % L1 reproduces the upstream quirk mlp_virtualnode_list[i-1]
    # (layer 0 uses the LAST virtual-node MLP). Intentional, NOT an off-by-one.
    vn = vn_mlp(add_pool(h), (0 - 1) % L1)            # vn = 0 + MLP(add_pool(h) + 0)

    # ---- layers 1 .. L-2 ----
    for i in range(1, L1):
        h = jnp.maximum(conv(h, i), 0.0)
        # broadcast vn to nodes via VPU select (sel columns), no MXU dot
        vn_nodes = side[:, 0:1] * vn[0:1, :]
        for g in range(1, G):
            vn_nodes = vn_nodes + side[:, g:g + 1] * vn[g:g + 1, :]
        h = h + vn_nodes
        vt = add_pool(h) + vn
        vn = vn + vn_mlp(vt, (i - 1) % L1)

    # ---- folded tail: last conv -> APPNP(K) -> mean-pool -> Linear
    #      == (R @ h) @ W_out + b_out ; R@h done as VPU weighted row-sums ----
    pooled = rows_to_mat(
        [jnp.sum(h * side[:, G + g:G + g + 1], axis=0, keepdims=True) for g in range(G)],
        H)                                             # [G, H] == R @ h
    o_ref[...] = (jnp.dot(pooled, wout_ref[...], preferred_element_type=f32)
                  + bout_ref[...])


def fused_forward(x, a_bf16, side, fp, b_out):
    args = (x, a_bf16, side,
            fp["conv_w"], fp["vn_w1"], fp["vn_w2"],
            fp["bias"], fp["w_out"], b_out)
    return pl.pallas_call(
        fused_forward_kernel,
        out_shape=jax.ShapeDtypeStruct((G, OUT), jnp.float32),
        grid=(1,),   # toy size: one grid step; serial grid split would be pure overhead
        in_specs=[_full_spec(a.shape) for a in args],
        out_specs=_full_spec((G, OUT)),
        compiler_params=pltpu.CompilerParams(dimension_semantics=("arbitrary",)),
    )(*args)


# ---------------- parameter init (deterministic, synthetic) ----------------
def init_params(key):
    ks = iter(jax.random.split(key, 96))
    p = {}
    # AtomEncoder: 9 embedding tables, summed
    p["atom_emb"] = [jax.random.normal(next(ks), (ATOM_TABLE, H), jnp.float32) * 0.1
                     for _ in range(NUM_ATOM_FEATS)]
    # in_degree encoder, padding_idx=0 -> row 0 is zeros
    deg = jax.random.normal(next(ks), (DEG_TABLE, H), jnp.float32) * 0.1
    p["deg_emb"] = deg.at[0].set(0.0)
    # GNN conv layers (GCN-style) with explicit eval-BN stats
    p["conv"] = []
    for _ in range(NUM_LAYERS):
        p["conv"].append({
            "w": jax.random.normal(next(ks), (H, H), jnp.float32) * 0.1,
            "b": jax.random.normal(next(ks), (1, H), jnp.float32) * 0.05,
            "gamma": 1.0 + jax.random.normal(next(ks), (1, H), jnp.float32) * 0.05,
            "beta": jax.random.normal(next(ks), (1, H), jnp.float32) * 0.05,
            "mean": jnp.zeros((1, H), jnp.float32),   # running_mean (eval)
            "var": jnp.ones((1, H), jnp.float32),     # running_var  (eval)
        })
    # virtual-node MLPs: Linear(H,2H)->BN->ReLU->Linear(2H,H)->BN->ReLU
    p["vn_mlp"] = []
    for _ in range(NUM_LAYERS - 1):
        p["vn_mlp"].append({
            "w1": jax.random.normal(next(ks), (H, 2 * H), jnp.float32) * 0.1,
            "b1": jax.random.normal(next(ks), (1, 2 * H), jnp.float32) * 0.05,
            "g1": 1.0 + jax.random.normal(next(ks), (1, 2 * H), jnp.float32) * 0.05,
            "be1": jax.random.normal(next(ks), (1, 2 * H), jnp.float32) * 0.05,
            "m1": jnp.zeros((1, 2 * H), jnp.float32),
            "v1": jnp.ones((1, 2 * H), jnp.float32),
            "w2": jax.random.normal(next(ks), (2 * H, H), jnp.float32) * 0.1,
            "b2": jax.random.normal(next(ks), (1, H), jnp.float32) * 0.05,
            "g2": 1.0 + jax.random.normal(next(ks), (1, H), jnp.float32) * 0.05,
            "be2": jax.random.normal(next(ks), (1, H), jnp.float32) * 0.05,
            "m2": jnp.zeros((1, H), jnp.float32),
            "v2": jnp.ones((1, H), jnp.float32),
        })
    # final aggregate Linear(H, OUT)
    p["agg_w"] = jax.random.normal(next(ks), (H, OUT), jnp.float32) * 0.1
    p["agg_b"] = jax.random.normal(next(ks), (1, OUT), jnp.float32) * 0.05
    return p


def _fold_linear_bn(w, b, gamma, beta, mean, var):
    """Fold eval BatchNorm1d into a preceding linear map along output columns.

    y = ((x @ w + b) - mean) * gamma / sqrt(var + eps) + beta
      =  x @ (w * scale) + (b * scale + beta - mean * scale)
    (also valid when A_hat multiplies from the left on rows).
    """
    scale = gamma / jnp.sqrt(var + BN_EPS)          # [1, out]
    shift = beta - mean * scale
    return w * scale, b * scale + shift


def fold_params(p):
    """Host-side f32 BN fold, linear-tail fold, bf16 weight stacking, bias packing."""
    convs = [_fold_linear_bn(c["w"], c["b"], c["gamma"], c["beta"], c["mean"], c["var"])
             for c in p["conv"]]
    fp = {}
    # only the first L-1 conv weights reach the kernel; last one is folded into W_out
    fp["conv_w"] = jnp.stack([w for w, _ in convs[:L1]]).astype(jnp.bfloat16)  # [L1,H,H]

    w1s, b1s, w2s, b2s = [], [], [], []
    for m in p["vn_mlp"]:
        w1, b1 = _fold_linear_bn(m["w1"], m["b1"], m["g1"], m["be1"], m["m1"], m["v1"])
        w2, b2 = _fold_linear_bn(m["w2"], m["b2"], m["g2"], m["be2"], m["m2"], m["v2"])
        w1s.append(w1); b1s.append(b1); w2s.append(w2); b2s.append(b2)
    fp["vn_w1"] = jnp.stack(w1s).astype(jnp.bfloat16)    # [L1, H, 2H]
    fp["vn_w2"] = jnp.stack(w2s).astype(jnp.bfloat16)    # [L1, 2H, H]

    # single lane-padded bias buffer: rows [0,L1)=conv_b, [L1,2L1)=vn_b1, [2L1,3L1)=vn_b2
    bias = jnp.zeros((3 * L1, 128), jnp.float32)
    for i in range(L1):
        bias = bias.at[i, :H].set(convs[i][1][0])
    for j in range(L1):
        bias = bias.at[L1 + j, :2 * H].set(b1s[j][0])
        bias = bias.at[2 * L1 + j, :H].set(b2s[j][0])
    fp["bias"] = bias                                    # [3*L1, 128]

    # folded linear tail (f32 on host): last conv (BN-folded) composed with agg Linear
    w_last, b_last = convs[NUM_LAYERS - 1]
    fp["w_out"] = w_last @ p["agg_w"]                    # [H, OUT]
    fp["tail_b_row"] = b_last @ p["agg_w"]               # [1, OUT]  (used in glue for b_out)
    fp["agg_b"] = p["agg_b"]                             # [1, OUT]
    return fp


# ---------------- forward (glue in JAX, hot path in one Pallas call) ----------------
@jax.jit
def network_gnn_forward(atom_x, in_degree, edge_index, batch, atom_emb, deg_emb, fp):
    # --- encoders (glue: integer gathers) ---
    x = jnp.zeros((N, H), jnp.float32)
    for f in range(NUM_ATOM_FEATS):
        x = x + atom_emb[f][atom_x[:, f]]
    x = x + deg_emb[jnp.clip(in_degree, 0, DEG_TABLE - 1)]

    # --- dense GCN-normalized adjacency with self-loops (glue) ---
    src, dst = edge_index[0], edge_index[1]
    A = jnp.zeros((N, N), jnp.float32).at[dst, src].add(1.0)
    A = A + jnp.eye(N, dtype=jnp.float32)
    dinv = 1.0 / jnp.sqrt(A.sum(axis=1))
    A_hat = A * dinv[:, None] * dinv[None, :]

    # --- pooling / broadcast matrices (glue) ---
    sel = jax.nn.one_hot(batch, G, dtype=jnp.float32)    # [N, G]
    pool_add = sel.T                                     # [G, N]
    counts = jnp.maximum(pool_add.sum(axis=1, keepdims=True), 1.0)  # empty-graph guard
    pool_mean = pool_add / counts                        # [G, N]

    # --- fold APPNP(K, alpha) + mean-pool + last conv + Linear into operators ---
    # z_{k+1} = (1-a) A z_k + a z_0  =>  z_K = M z_0 with M_{k+1} = (1-a) A M_k + a I
    T = (1.0 - ALPHA) * A_hat
    eye = jnp.eye(N, dtype=jnp.float32)
    M = eye
    for _ in range(K_APPNP):
        M = T @ M + ALPHA * eye
    P = pool_mean @ M                                    # [G, N]
    R = P @ A_hat                                        # [G, N]  (absorbs last-conv aggregation)
    b_out = P.sum(axis=1, keepdims=True) * fp["tail_b_row"] + fp["agg_b"]   # [G, OUT]
    side = jnp.concatenate([sel, R.T], axis=1)           # [N, 2G] single column-matrix input

    # --- one fused Pallas kernel for the entire GNN + readout ---
    return fused_forward(x, A_hat.astype(jnp.bfloat16), side, fp, b_out)


# ---------------- main ----------------
if __name__ == "__main__":
    key = jax.random.PRNGKey(0)
    k_x, k_p = jax.random.split(key)

    # synthetic deterministic graph batch: 2 ring graphs of 8 nodes each
    atom_x = jax.random.randint(k_x, (N, NUM_ATOM_FEATS), 0, ATOM_TABLE, dtype=jnp.int32)
    batch = jnp.repeat(jnp.arange(G, dtype=jnp.int32), N // G)

    srcs, dsts = [], []
    for g in range(G):
        base = g * (N // G)
        for n in range(N // G):
            a = base + n
            b = base + (n + 1) % (N // G)
            srcs += [a, b]
            dsts += [b, a]
    edge_index = jnp.array([srcs, dsts], dtype=jnp.int32)   # [2, E]

    # make_degree: in-degree per node (counts of incoming edges)
    in_degree = jnp.zeros((N,), jnp.int32).at[edge_index[1]].add(1)

    params = init_params(k_p)
    fp = fold_params(params)      # host-side BN fold + tail fold + packing (done once)

    out = network_gnn_forward(atom_x, in_degree, edge_index, batch,
                              params["atom_emb"], params["deg_emb"], fp)
    out = jax.block_until_ready(out)
    assert out.shape == (G, OUT) and out.dtype == jnp.float32
    assert bool(jnp.all(jnp.isfinite(out)))
    print("KERNEL_OK")
</pallas_src>

<mosaic_0001>
module attributes {stable_mosaic.version = 11 : i64} {
  func.func private @main(%arg0: i32) attributes {dimension_semantics = [#tpu.dimension_semantics<core_parallel>], iteration_bounds = array<i64: 2>, tpu.core_type = #tpu.core_type<sc_scalar_subcore>, window_params = []} {
    return
  }
}

module attributes {stable_mosaic.version = 11 : i64} {
  func.func private @main(%arg0: i32) attributes {dimension_semantics = [#tpu.dimension_semantics<core_parallel>], iteration_bounds = array<i64: 2>, tpu.core_type = #tpu.core_type<sc_scalar_subcore>, window_params = []} {
    return
  }
}

module attributes {stable_mosaic.version = 11 : i64} {
  func.func @fused_forward_kernel(%arg0: i32, %arg1: memref<16x32xf32, #tpu.memory_space<vmem>>, %arg2: memref<16x16xbf16, #tpu.memory_space<vmem>>, %arg3: memref<16x4xf32, #tpu.memory_space<vmem>>, %arg4: memref<2x32x32xbf16, #tpu.memory_space<vmem>>, %arg5: memref<2x32x64xbf16, #tpu.memory_space<vmem>>, %arg6: memref<2x64x32xbf16, #tpu.memory_space<vmem>>, %arg7: memref<6x128xf32, #tpu.memory_space<vmem>>, %arg8: memref<32x16xf32, #tpu.memory_space<vmem>>, %arg9: memref<2x16xf32, #tpu.memory_space<vmem>>, %arg10: memref<2x16xf32, #tpu.memory_space<vmem>>) attributes {dimension_semantics = [#tpu.dimension_semantics<arbitrary>], iteration_bounds = array<i64: 1>, scalar_prefetch = 0 : i64, scratch_operands = 0 : i64, tpu.core_type = #tpu.core_type<tc>, window_params = [{pipeline_mode = #tpu.pipeline_mode<synchronous>, transform_indices = @transform_0, window_bounds = array<i64: 16, 32>}, {pipeline_mode = #tpu.pipeline_mode<synchronous>, transform_indices = @transform_1, window_bounds = array<i64: 16, 16>}, {pipeline_mode = #tpu.pipeline_mode<synchronous>, transform_indices = @transform_2, window_bounds = array<i64: 16, 4>}, {pipeline_mode = #tpu.pipeline_mode<synchronous>, transform_indices = @transform_3, window_bounds = array<i64: 2, 32, 32>}, {pipeline_mode = #tpu.pipeline_mode<synchronous>, transform_indices = @transform_4, window_bounds = array<i64: 2, 32, 64>}, {pipeline_mode = #tpu.pipeline_mode<synchronous>, transform_indices = @transform_5, window_bounds = array<i64: 2, 64, 32>}, {pipeline_mode = #tpu.pipeline_mode<synchronous>, transform_indices = @transform_6, window_bounds = array<i64: 6, 128>}, {pipeline_mode = #tpu.pipeline_mode<synchronous>, transform_indices = @transform_7, window_bounds = array<i64: 32, 16>}, {pipeline_mode = #tpu.pipeline_mode<synchronous>, transform_indices = @transform_8, window_bounds = array<i64: 2, 16>}, {pipeline_mode = #tpu.pipeline_mode<synchronous>, transform_indices = @transform_9, window_bounds = array<i64: 2, 16>}]} {
    %c0 = arith.constant 0 : index
    %c0_0 = arith.constant 0 : index
    %0 = vector.load %arg1[%c0, %c0_0] : memref<16x32xf32, #tpu.memory_space<vmem>>, vector<16x32xf32>
    %c0_1 = arith.constant 0 : index
    %c0_2 = arith.constant 0 : index
    %1 = vector.load %arg2[%c0_1, %c0_2] : memref<16x16xbf16, #tpu.memory_space<vmem>>, vector<16x16xbf16>
    %c0_3 = arith.constant 0 : index
    %c0_4 = arith.constant 0 : index
    %2 = vector.load %arg3[%c0_3, %c0_4] : memref<16x4xf32, #tpu.memory_space<vmem>>, vector<16x4xf32>
    %3 = arith.truncf %0 : vector<16x32xf32> to vector<16x32xbf16>
    %c0_5 = arith.constant 0 : index
    %c0_6 = arith.constant 0 : index
    %c0_7 = arith.constant 0 : index
    %4 = vector.load %arg4[%c0_5, %c0_6, %c0_7] : memref<2x32x32xbf16, #tpu.memory_space<vmem>>, vector<1x32x32xbf16>
    %5 = vector.shape_cast %4 : vector<1x32x32xbf16> to vector<32x32xbf16>
    %cst = arith.constant dense<0.000000e+00> : vector<16x32xf32>
    %6 = tpu.matmul %3, %5, %cst {dimension_numbers = #tpu.dot_dimension_numbers<[1], [0], [0], [1], [0, 0, 1, 1], [], []>} : vector<16x32xbf16>, vector<32x32xbf16>, vector<16x32xf32> -> vector<16x32xf32>
    %7 = arith.truncf %6 : vector<16x32xf32> to vector<16x32xbf16>
    %cst_8 = arith.constant dense<0.000000e+00> : vector<16x32xf32>
    %8 = tpu.matmul %1, %7, %cst_8 {dimension_numbers = #tpu.dot_dimension_numbers<[1], [0], [0], [1], [0, 0, 1, 1], [], []>} : vector<16x16xbf16>, vector<16x32xbf16>, vector<16x32xf32> -> vector<16x32xf32>
    %c0_9 = arith.constant 0 : index
    %c0_10 = arith.constant 0 : index
    %9 = vector.load %arg7[%c0_9, %c0_10] : memref<6x128xf32, #tpu.memory_space<vmem>>, vector<1x32xf32>
    %10 = vector.broadcast %9 : vector<1x32xf32> to vector<16x32xf32>
    %11 = arith.addf %8, %10 : vector<16x32xf32>
    %cst_11 = arith.constant 0.000000e+00 : f32
    %12 = vector.broadcast %cst_11 : f32 to vector<16x32xf32>
    %13 = arith.maximumf %11, %12 : vector<16x32xf32>
    %14 = vector.extract_strided_slice %2 {offsets = [0, 0], sizes = [16, 1], strides = [1, 1]} : vector<16x4xf32> to vector<16x1xf32>
    %15 = vector.broadcast %14 : vector<16x1xf32> to vector<16x32xf32>
    %16 = arith.mulf %13, %15 : vector<16x32xf32>
    %cst_12 = arith.constant dense<0.000000e+00> : vector<32xf32>
    %17 = vector.multi_reduction <add>, %16, %cst_12 [0] : vector<16x32xf32> to vector<32xf32>
    %18 = vector.shape_cast %17 : vector<32xf32> to vector<1x32xf32>
    %19 = vector.extract_strided_slice %2 {offsets = [0, 1], sizes = [16, 1], strides = [1, 1]} : vector<16x4xf32> to vector<16x1xf32>
    %20 = vector.broadcast %19 : vector<16x1xf32> to vector<16x32xf32>
    %21 = arith.mulf %13, %20 : vector<16x32xf32>
    %cst_13 = arith.constant dense<0.000000e+00> : vector<32xf32>
    %22 = vector.multi_reduction <add>, %21, %cst_13 [0] : vector<16x32xf32> to vector<32xf32>
    %23 = vector.shape_cast %22 : vector<32xf32> to vector<1x32xf32>
    %24 = tpu.iota {dimensions = array<i32: 0>} : vector<2x32xi32>
    %cst_14 = arith.constant 0.000000e+00 : f32
    %25 = vector.broadcast %cst_14 : f32 to vector<2x32xf32>
    %c0_i32 = arith.constant 0 : i32
    %26 = vector.broadcast %c0_i32 : i32 to vector<2x32xi32>
    %27 = arith.cmpi eq, %24, %26 : vector<2x32xi32>
    %cst_15 = arith.constant 0.000000e+00 : f32
    %28 = vector.shape_cast %18 : vector<1x32xf32> to vector<1x32xf32>
    %29 = vector.broadcast %28 : vector<1x32xf32> to vector<2x32xf32>
    %30 = vector.broadcast %cst_15 : f32 to vector<2x32xf32>
    %31 = arith.select %27, %29, %30 : vector<2x32xi1>, vector<2x32xf32>
    %32 = arith.addf %25, %31 : vector<2x32xf32>
    %c1_i32 = arith.constant 1 : i32
    %33 = vector.broadcast %c1_i32 : i32 to vector<2x32xi32>
    %34 = arith.cmpi eq, %24, %33 : vector<2x32xi32>
    %cst_16 = arith.constant 0.000000e+00 : f32
    %35 = vector.shape_cast %23 : vector<1x32xf32> to vector<1x32xf32>
    %36 = vector.broadcast %35 : vector<1x32xf32> to vector<2x32xf32>
    %37 = vector.broadcast %cst_16 : f32 to vector<2x32xf32>
    %38 = arith.select %34, %36, %37 : vector<2x32xi1>, vector<2x32xf32>
    %39 = arith.addf %32, %38 : vector<2x32xf32>
    %40 = arith.truncf %39 : vector<2x32xf32> to vector<2x32xbf16>
    %c1 = arith.constant 1 : index
    %c0_17 = arith.constant 0 : index
    %c0_18 = arith.constant 0 : index
    %41 = vector.load %arg5[%c1, %c0_17, %c0_18] : memref<2x32x64xbf16, #tpu.memory_space<vmem>>, vector<1x32x64xbf16>
    %42 = vector.shape_cast %41 : vector<1x32x64xbf16> to vector<32x64xbf16>
    %cst_19 = arith.constant dense<0.000000e+00> : vector<2x64xf32>
    %43 = tpu.matmul %40, %42, %cst_19 {dimension_numbers = #tpu.dot_dimension_numbers<[1], [0], [0], [1], [0, 0, 1, 1], [], []>} : vector<2x32xbf16>, vector<32x64xbf16>, vector<2x64xf32> -> vector<2x64xf32>
    %c3 = arith.constant 3 : index
    %c0_20 = arith.constant 0 : index
    %44 = vector.load %arg7[%c3, %c0_20] : memref<6x128xf32, #tpu.memory_space<vmem>>, vector<1x64xf32>
    %45 = vector.broadcast %44 : vector<1x64xf32> to vector<2x64xf32>
    %46 = arith.addf %43, %45 : vector<2x64xf32>
    %cst_21 = arith.constant 0.000000e+00 : f32
    %47 = vector.broadcast %cst_21 : f32 to vector<2x64xf32>
    %48 = arith.maximumf %46, %47 : vector<2x64xf32>
    %49 = arith.truncf %48 : vector<2x64xf32> to vector<2x64xbf16>
    %c1_22 = arith.constant 1 : index
    %c0_23 = arith.constant 0 : index
    %c0_24 = arith.constant 0 : index
    %50 = vector.load %arg6[%c1_22, %c0_23, %c0_24] : memref<2x64x32xbf16, #tpu.memory_space<vmem>>, vector<1x64x32xbf16>
    %51 = vector.shape_cast %50 : vector<1x64x32xbf16> to vector<64x32xbf16>
    %cst_25 = arith.constant dense<0.000000e+00> : vector<2x32xf32>
    %52 = tpu.matmul %49, %51, %cst_25 {dimension_numbers = #tpu.dot_dimension_numbers<[1], [0], [0], [1], [0, 0, 1, 1], [], []>} : vector<2x64xbf16>, vector<64x32xbf16>, vector<2x32xf32> -> vector<2x32xf32>
    %c5 = arith.constant 5 : index
    %c0_26 = arith.constant 0 : index
    %53 = vector.load %arg7[%c5, %c0_26] : memref<6x128xf32, #tpu.memory_space<vmem>>, vector<1x32xf32>
    %54 = vector.broadcast %53 : vector<1x32xf32> to vector<2x32xf32>
    %55 = arith.addf %52, %54 : vector<2x32xf32>
    %cst_27 = arith.constant 0.000000e+00 : f32
    %56 = vector.broadcast %cst_27 : f32 to vector<2x32xf32>
    %57 = arith.maximumf %55, %56 : vector<2x32xf32>
    %58 = arith.truncf %13 : vector<16x32xf32> to vector<16x32xbf16>
    %c1_28 = arith.constant 1 : index
    %c0_29 = arith.constant 0 : index
    %c0_30 = arith.constant 0 : index
    %59 = vector.load %arg4[%c1_28, %c0_29, %c0_30] : memref<2x32x32xbf16, #tpu.memory_space<vmem>>, vector<1x32x32xbf16>
    %60 = vector.shape_cast %59 : vector<1x32x32xbf16> to vector<32x32xbf16>
    %cst_31 = arith.constant dense<0.000000e+00> : vector<16x32xf32>
    %61 = tpu.matmul %58, %60, %cst_31 {dimension_numbers = #tpu.dot_dimension_numbers<[1], [0], [0], [1], [0, 0, 1, 1], [], []>} : vector<16x32xbf16>, vector<32x32xbf16>, vector<16x32xf32> -> vector<16x32xf32>
    %62 = arith.truncf %61 : vector<16x32xf32> to vector<16x32xbf16>
    %cst_32 = arith.constant dense<0.000000e+00> : vector<16x32xf32>
    %63 = tpu.matmul %1, %62, %cst_32 {dimension_numbers = #tpu.dot_dimension_numbers<[1], [0], [0], [1], [0, 0, 1, 1], [], []>} : vector<16x16xbf16>, vector<16x32xbf16>, vector<16x32xf32> -> vector<16x32xf32>
    %c1_33 = arith.constant 1 : index
    %c0_34 = arith.constant 0 : index
    %64 = vector.load %arg7[%c1_33, %c0_34] : memref<6x128xf32, #tpu.memory_space<vmem>>, vector<1x32xf32>
    %65 = vector.broadcast %64 : vector<1x32xf32> to vector<16x32xf32>
    %66 = arith.addf %63, %65 : vector<16x32xf32>
    %cst_35 = arith.constant 0.000000e+00 : f32
    %67 = vector.broadcast %cst_35 : f32 to vector<16x32xf32>
    %68 = arith.maximumf %66, %67 : vector<16x32xf32>
    %69 = vector.extract_strided_slice %2 {offsets = [0, 0], sizes = [16, 1], strides = [1, 1]} : vector<16x4xf32> to vector<16x1xf32>
    %70 = vector.extract_strided_slice %57 {offsets = [0, 0], sizes = [1, 32], strides = [1, 1]} : vector<2x32xf32> to vector<1x32xf32>
    %71 = vector.broadcast %69 : vector<16x1xf32> to vector<16x32xf32>
    %72 = vector.broadcast %70 : vector<1x32xf32> to vector<16x32xf32>
    %73 = arith.mulf %71, %72 : vector<16x32xf32>
    %74 = vector.extract_strided_slice %2 {offsets = [0, 1], sizes = [16, 1], strides = [1, 1]} : vector<16x4xf32> to vector<16x1xf32>
    %75 = vector.extract_strided_slice %57 {offsets = [1, 0], sizes = [1, 32], strides = [1, 1]} : vector<2x32xf32> to vector<1x32xf32>
    %76 = vector.broadcast %74 : vector<16x1xf32> to vector<16x32xf32>
    %77 = vector.broadcast %75 : vector<1x32xf32> to vector<16x32xf32>
    %78 = arith.mulf %76, %77 : vector<16x32xf32>
    %79 = arith.addf %73, %78 : vector<16x32xf32>
    %80 = arith.addf %68, %79 : vector<16x32xf32>
    %81 = vector.extract_strided_slice %2 {offsets = [0, 2], sizes = [16, 1], strides = [1, 1]} : vector<16x4xf32> to vector<16x1xf32>
    %82 = vector.broadcast %81 : vector<16x1xf32> to vector<16x32xf32>
    %83 = arith.mulf %80, %82 : vector<16x32xf32>
    %cst_36 = arith.constant dense<0.000000e+00> : vector<32xf32>
    %84 = vector.multi_reduction <add>, %83, %cst_36 [0] : vector<16x32xf32> to vector<32xf32>
    %85 = vector.shape_cast %84 : vector<32xf32> to vector<1x32xf32>
    %86 = vector.extract_strided_slice %2 {offsets = [0, 3], sizes = [16, 1], strides = [1, 1]} : vector<16x4xf32> to vector<16x1xf32>
    %87 = vector.broadcast %86 : vector<16x1xf32> to vector<16x32xf32>
    %88 = arith.mulf %80, %87 : vector<16x32xf32>
    %cst_37 = arith.constant dense<0.000000e+00> : vector<32xf32>
    %89 = vector.multi_reduction <add>, %88, %cst_37 [0] : vector<16x32xf32> to vector<32xf32>
    %90 = vector.shape_cast %89 : vector<32xf32> to vector<1x32xf32>
    %91 = tpu.iota {dimensions = array<i32: 0>} : vector<2x32xi32>
    %cst_38 = arith.constant 0.000000e+00 : f32
    %92 = vector.broadcast %cst_38 : f32 to vector<2x32xf32>
    %c0_i32_39 = arith.constant 0 : i32
    %93 = vector.broadcast %c0_i32_39 : i32 to vector<2x32xi32>
    %94 = arith.cmpi eq, %91, %93 : vector<2x32xi32>
    %cst_40 = arith.constant 0.000000e+00 : f32
    %95 = vector.shape_cast %85 : vector<1x32xf32> to vector<1x32xf32>
    %96 = vector.broadcast %95 : vector<1x32xf32> to vector<2x32xf32>
    %97 = vector.broadcast %cst_40 : f32 to vector<2x32xf32>
    %98 = arith.select %94, %96, %97 : vector<2x32xi1>, vector<2x32xf32>
    %99 = arith.addf %92, %98 : vector<2x32xf32>
    %c1_i32_41 = arith.constant 1 : i32
    %100 = vector.broadcast %c1_i32_41 : i32 to vector<2x32xi32>
    %101 = arith.cmpi eq, %91, %100 : vector<2x32xi32>
    %cst_42 = arith.constant 0.000000e+00 : f32
    %102 = vector.shape_cast %90 : vector<1x32xf32> to vector<1x32xf32>
    %103 = vector.broadcast %102 : vector<1x32xf32> to vector<2x32xf32>
    %104 = vector.broadcast %cst_42 : f32 to vector<2x32xf32>
    %105 = arith.select %101, %103, %104 : vector<2x32xi1>, vector<2x32xf32>
    %106 = arith.addf %99, %105 : vector<2x32xf32>
    %c0_43 = arith.constant 0 : index
    %c0_44 = arith.constant 0 : index
    %107 = vector.load %arg8[%c0_43, %c0_44] : memref<32x16xf32, #tpu.memory_space<vmem>>, vector<32x16xf32>
    %cst_45 = arith.constant dense<0.000000e+00> : vector<2x16xf32>
    %108 = tpu.matmul %106, %107, %cst_45 {dimension_numbers = #tpu.dot_dimension_numbers<[1], [0], [0], [1], [0, 0, 1, 1], [], []>} : vector<2x32xf32>, vector<32x16xf32>, vector<2x16xf32> -> vector<2x16xf32>
    %c0_46 = arith.constant 0 : index
    %c0_47 = arith.constant 0 : index
    %109 = vector.load %arg9[%c0_46, %c0_47] : memref<2x16xf32, #tpu.memory_space<vmem>>, vector<2x16xf32>
    %110 = arith.addf %108, %109 : vector<2x16xf32>
    %c0_48 = arith.constant 0 : index
    %c0_49 = arith.constant 0 : index
    %111 = vector.load %arg10[%c0_48, %c0_49] : memref<2x16xf32, #tpu.memory_space<vmem>>, vector<2x16xf32>
    tpu.vector_store %arg10[%c0_48, %c0_49], %110 {strides = array<i32>} : memref<2x16xf32, #tpu.memory_space<vmem>>, vector<2x16xf32>,
    return
  }
  func.func @transform_0(%arg0: i32) -> (i32, i32) {
    %c0_i32 = arith.constant 0 : i32
    %c0_i32_0 = arith.constant 0 : i32
    %c0_i32_1 = arith.constant 0 : i32
    return %c0_i32, %c0_i32_0 : i32, i32
  }
  func.func @transform_1(%arg0: i32) -> (i32, i32) {
    %c0_i32 = arith.constant 0 : i32
    %c0_i32_0 = arith.constant 0 : i32
    %c0_i32_1 = arith.constant 0 : i32
    return %c0_i32, %c0_i32_0 : i32, i32
  }
  func.func @transform_2(%arg0: i32) -> (i32, i32) {
    %c0_i32 = arith.constant 0 : i32
    %c0_i32_0 = arith.constant 0 : i32
    %c0_i32_1 = arith.constant 0 : i32
    return %c0_i32, %c0_i32_0 : i32, i32
  }
  func.func @transform_3(%arg0: i32) -> (i32, i32, i32) {
    %c0_i32 = arith.constant 0 : i32
    %c0_i32_0 = arith.constant 0 : i32
    %c0_i32_1 = arith.constant 0 : i32
    %c0_i32_2 = arith.constant 0 : i32
    return %c0_i32, %c0_i32_0, %c0_i32_1 : i32, i32, i32
  }
  func.func @transform_4(%arg0: i32) -> (i32, i32, i32) {
    %c0_i32 = arith.constant 0 : i32
    %c0_i32_0 = arith.constant 0 : i32
    %c0_i32_1 = arith.constant 0 : i32
    %c0_i32_2 = arith.constant 0 : i32
    return %c0_i32, %c0_i32_0, %c0_i32_1 : i32, i32, i32
  }
  func.func @transform_5(%arg0: i32) -> (i32, i32, i32) {
    %c0_i32 = arith.constant 0 : i32
    %c0_i32_0 = arith.constant 0 : i32
    %c0_i32_1 = arith.constant 0 : i32
    %c0_i32_2 = arith.constant 0 : i32
    return %c0_i32, %c0_i32_0, %c0_i32_1 : i32, i32, i32
  }
  func.func @transform_6(%arg0: i32) -> (i32, i32) {
    %c0_i32 = arith.constant 0 : i32
    %c0_i32_0 = arith.constant 0 : i32
    %c0_i32_1 = arith.constant 0 : i32
    return %c0_i32, %c0_i32_0 : i32, i32
  }
  func.func @transform_7(%arg0: i32) -> (i32, i32) {
    %c0_i32 = arith.constant 0 : i32
    %c0_i32_0 = arith.constant 0 : i32
    %c0_i32_1 = arith.constant 0 : i32
    return %c0_i32, %c0_i32_0 : i32, i32
  }
  func.func @transform_8(%arg0: i32) -> (i32, i32) {
    %c0_i32 = arith.constant 0 : i32
    %c0_i32_0 = arith.constant 0 : i32
    %c0_i32_1 = arith.constant 0 : i32
    return %c0_i32, %c0_i32_0 : i32, i32
  }
  func.func @transform_9(%arg0: i32) -> (i32, i32) {
    %c0_i32 = arith.constant 0 : i32
    %c0_i32_0 = arith.constant 0 : i32
    %c0_i32_1 = arith.constant 0 : i32
    return %c0_i32, %c0_i32_0 : i32, i32
  }
}

</mosaic_0001>

<llo_original>
// kernel: network_gnn_forward.1
$region0: #{network_gnn_forward.1}
  #allocation0 [shape = 'u32[]', space=smem, size = 0x4, offset = 0x4, fixed_abs, tag = 'smem constant byte address 0x4 - core index']
  #allocation1 [shape = 'u32[144,128]{1,0:T(1,128)}', space=vmem, size = 0x12000, scoped, tag = 'internal scratch']
  %s0 = inlined_call_operand.vmem [shape: f32[16,32], index: 0, kind: input, shape index: {}]
  %s1 = inlined_call_operand.vmem [shape: bf16[16,16], index: 1, kind: input, shape index: {}]
  %s2 = inlined_call_operand.vmem [shape: f32[16,4], index: 2, kind: input, shape index: {}]
  %s3 = inlined_call_operand.vmem [shape: bf16[2,32,32], index: 3, kind: input, shape index: {}]
  %s4 = inlined_call_operand.vmem [shape: bf16[2,32,64], index: 4, kind: input, shape index: {}]
  %s5 = inlined_call_operand.vmem [shape: bf16[2,64,32], index: 5, kind: input, shape index: {}]
  %s6 = inlined_call_operand.vmem [shape: f32[6,128], index: 6, kind: input, shape index: {}]
  %s7 = inlined_call_operand.vmem [shape: f32[32,16], index: 7, kind: input, shape index: {}]
  %s8 = inlined_call_operand.vmem [shape: f32[2,16], index: 8, kind: input, shape index: {}]
  %s9 = inlined_call_operand.hbm [shape: f32[2,16], index: 9, kind: output, shape index: {}]
  %s10 = sld [smem:[#allocation0]]
  $region46: #{network_gnn_forward.1} parent=0
    _
  %s12 = ssub.s32 1, %s10
  %s13 = scalar_select 0, %s12, %s10
  $region1: #{network_gnn_forward.1} parent=0
    #allocation2 [shape = 'u8[1024]{0}', space=vmem, size = 0x400, scoped, tag = 'output window, operand 0, single buffered']
    #allocation3 [shape = 's32[1]{0}', space=sflag, size = 0x4, scoped, tag = 'scoped memory for network_gnn_forward.1']
    %14 = vsyncpa [#allocation3], 0
    // Predicated region
    $region2: #{network_gnn_forward.1} parent=1 // pred_check
      _
    $region3: #{network_gnn_forward.1} parent=1 // pred_check_branch
      %16 = sbr.rel (0) target = $region5
    $region4: #{network_gnn_forward.1} parent=1 // pred_region
      _
    $region5: #{network_gnn_forward.1} parent=1 // pred_fallthru
      _
    // Predicated region
    $region6: #{network_gnn_forward.1} parent=1 // pred_check
      _
    $region7: #{network_gnn_forward.1} parent=1 // pred_check_branch
      %18 = sbr.rel (0) target = $region9
    $region8: #{network_gnn_forward.1} parent=1 // pred_region
      _
    $region9: #{network_gnn_forward.1} parent=1 // pred_fallthru
      _
    // Predicated region
    $region10: #{network_gnn_forward.1} parent=1 // pred_check
      _
    $region11: #{network_gnn_forward.1} parent=1 // pred_check_branch
      %20 = sbr.rel (0) target = $region13
    $region12: #{network_gnn_forward.1} parent=1 // pred_region
      _
    $region13: #{network_gnn_forward.1} parent=1 // pred_fallthru
      _
    // Predicated region
    $region14: #{network_gnn_forward.1} parent=1 // pred_check
      _
    $region15: #{network_gnn_forward.1} parent=1 // pred_check_branch
      %22 = sbr.rel (0) target = $region17
    $region16: #{network_gnn_forward.1} parent=1 // pred_region
      _
    $region17: #{network_gnn_forward.1} parent=1 // pred_fallthru
      _
    // Predicated region
    $region18: #{network_gnn_forward.1} parent=1 // pred_check
      _
    $region19: #{network_gnn_forward.1} parent=1 // pred_check_branch
      %24 = sbr.rel (0) target = $region21
    $region20: #{network_gnn_forward.1} parent=1 // pred_region
      _
    $region21: #{network_gnn_forward.1} parent=1 // pred_fallthru
      _
    // Predicated region
    $region22: #{network_gnn_forward.1} parent=1 // pred_check
      _
    $region23: #{network_gnn_forward.1} parent=1 // pred_check_branch
      %26 = sbr.rel (0) target = $region25
    $region24: #{network_gnn_forward.1} parent=1 // pred_region
      _
    $region25: #{network_gnn_forward.1} parent=1 // pred_fallthru
      _
    // Predicated region
    $region26: #{network_gnn_forward.1} parent=1 // pred_check
      _
    $region27: #{network_gnn_forward.1} parent=1 // pred_check_branch
      %28 = sbr.rel (0) target = $region29
    $region28: #{network_gnn_forward.1} parent=1 // pred_region
      _
    $region29: #{network_gnn_forward.1} parent=1 // pred_fallthru
      _
    // Predicated region
    $region30: #{network_gnn_forward.1} parent=1 // pred_check
      _
    $region31: #{network_gnn_forward.1} parent=1 // pred_check_branch
      %30 = sbr.rel (0) target = $region33
    $region32: #{network_gnn_forward.1} parent=1 // pred_region
      _
    $region33: #{network_gnn_forward.1} parent=1 // pred_fallthru
      _
    // Predicated region
    $region34: #{network_gnn_forward.1} parent=1 // pred_check
      _
    $region35: #{network_gnn_forward.1} parent=1 // pred_check_branch
      %32 = sbr.rel (0) target = $region37
    $region36: #{network_gnn_forward.1} parent=1 // pred_region
      _
    $region37: #{network_gnn_forward.1} parent=1 // pred_fallthru
      _
    %v34 = vld [vmem:[%s0] sm:$0xff]
    %v35 = vld [vmem:[%s0 + $0x8] sm:$0xff]
    %v36 = vld [vmem:[%s1] sm:$0xf]
    %v37 = vld [vmem:[%s1 + $0x4] sm:$0xf]
    %v38 = vld [vmem:[%s2] sm:$0xff]
    %v39 = vld [vmem:[%s2 + $0x8] sm:$0xff]
    %v40 = vpack.c.bf16 %v35, %v34
    %v41 = vld [vmem:[%s3] sm:$0xf]
    %v42 = vld [vmem:[%s3 + $0x4] sm:$0xf]
    %v43 = vld [vmem:[%s3 + $0x8] sm:$0xf]
    %v44 = vld [vmem:[%s3 + $0xc] sm:$0xf]
    %v49 = vunpack.c.l.b16 %v41
    %v50 = vunpack.c.l.b16 %v42
    %v51 = vunpack.c.l.b16 %v43
    %v52 = vunpack.c.l.b16 %v44
    %v53 = vpack.c.b16 %v50, %v49
    %v54 = vpack.c.b16 %v52, %v51
    %vm57 = vcmask 261120
    %v59 = vsel %vm57, %v40, 0
    %61 = vmatprep.subr.bf16.mxu0 0
    %62 = vmatpush1.bf16.msra.mxu0 %v53
    %63 = vmatprep.subr.bf16.mxu0 0
    %64 = vmatpush1.bf16.msra.mxu0 %v54
    %65 = vmatprep.subr.bf16.mxu0 0
    %66 = vmatpush1.bf16.msra.mxu0 0
    %67 = vmatprep.subr.bf16.mxu0 0
    %68 = vmatpush1.bf16.msra.mxu0 0
    %69 = vmatprep.subr.bf16.mxu0 0
    %70 = vmatpush1.bf16.msra.mxu0 0
    %71 = vmatprep.subr.bf16.mxu0 0
    %72 = vmatpush1.bf16.msra.mxu0 0
    %73 = vmatprep.subr.bf16.mxu0 0
    %74 = vmatpush1.bf16.msra.mxu0 0
    %75 = vmatprep.subr.bf16.mxu0 0
    %76 = vmatpush1.bf16.msra.mxu0 0
    %77 = vmatprep.subr.bf16.mxu0 0
    %78 = vmatpush1.bf16.msra.mxu0 0
    %79 = vmatprep.subr.bf16.mxu0 0
    %80 = vmatpush1.bf16.msra.mxu0 0
    %81 = vmatprep.subr.bf16.mxu0 0
    %82 = vmatpush1.bf16.msra.mxu0 0
    %83 = vmatprep.subr.bf16.mxu0 0
    %84 = vmatpush1.bf16.msra.mxu0 0
    %85 = vmatprep.subr.bf16.mxu0 0
    %86 = vmatpush1.bf16.msra.mxu0 0
    %87 = vmatprep.subr.bf16.mxu0 0
    %88 = vmatpush1.bf16.msra.mxu0 0
    %89 = vmatprep.subr.bf16.mxu0 0
    %90 = vmatpush1.bf16.msra.mxu0 0
    %91 = vmatprep.subr.bf16.mxu0 0
    %92 = vmatpush1.bf16.msra.mxu0 0
    %93 = vmatprep.mubr.bf16.mxu0 0
    %94 = vmatmul.mubr.bf16.gmra.mrb[0].mxu0 %v59
    %v95 = vpop.f32.mrb[0].mxu0
    %v96 = vadd.f32 0.0, %v95
    %v97 = vpop.f32.mrb[0].mxu0
    %v98 = vpop.f32.mrb[0].mxu0
    %v99 = vadd.f32 0.0, %v98
    %v100 = vpop.f32.mrb[0].mxu0
    %101 = vdwg.mxu0
    %v102 = vpack.c.bf16 %v99, %v96
    %v103 = vld [vmem:[%s6] sm:$0x1]
    %v104 = vlaneseq
    %v105 = vshrl.u32 %v104, 7
    %v106 = vsub.s32 0, %v105
    %v107 = vrot.slane %v103, %v106
    %v110 = vunpack.c.l.b16 %v36
    %v111 = vunpack.c.l.b16 %v37
    %v112 = vpack.c.b16 %v111, %v110
    %vm113 = vcmask 130048
    %v115 = vsel %vm113, %v112, 0
    %117 = vmatprep.subr.bf16.mxu0 0
    %118 = vmatpush1.bf16.msra.mxu0 %v102
    %119 = vmatprep.subr.bf16.mxu0 0
    %120 = vmatpush1.bf16.msra.mxu0 0
    %121 = vmatprep.subr.bf16.mxu0 0
    %122 = vmatpush1.bf16.msra.mxu0 0
    %123 = vmatprep.subr.bf16.mxu0 0
    %124 = vmatpush1.bf16.msra.mxu0 0
    %125 = vmatprep.subr.bf16.mxu0 0
    %126 = vmatpush1.bf16.msra.mxu0 0
    %127 = vmatprep.subr.bf16.mxu0 0
    %128 = vmatpush1.bf16.msra.mxu0 0
    %129 = vmatprep.subr.bf16.mxu0 0
    %130 = vmatpush1.bf16.msra.mxu0 0
    %131 = vmatprep.subr.bf16.mxu0 0
    %132 = vmatpush1.bf16.msra.mxu0 0
    %133 = vmatprep.subr.bf16.mxu0 0
    %134 = vmatpush1.bf16.msra.mxu0 0
    %135 = vmatprep.subr.bf16.mxu0 0
    %136 = vmatpush1.bf16.msra.mxu0 0
    %137 = vmatprep.subr.bf16.mxu0 0
    %138 = vmatpush1.bf16.msra.mxu0 0
    %139 = vmatprep.subr.bf16.mxu0 0
    %140 = vmatpush1.bf16.msra.mxu0 0
    %141 = vmatprep.subr.bf16.mxu0 0
    %142 = vmatpush1.bf16.msra.mxu0 0
    %143 = vmatprep.subr.bf16.mxu0 0
    %144 = vmatpush1.bf16.msra.mxu0 0
    %145 = vmatprep.subr.bf16.mxu0 0
    %146 = vmatpush1.bf16.msra.mxu0 0
    %147 = vmatprep.subr.bf16.mxu0 0
    %148 = vmatpush1.bf16.msra.mxu0 0
    %149 = vmatprep.mubr.bf16.mxu0 0
    %150 = vmatmul.mubr.bf16.gmra.mrb[0].mxu0 %v115
    %v151 = vpop.f32.mrb[0].mxu0
    %v152 = vadd.f32 %v107, %v151
    %v153 = vpop.f32.mrb[0].mxu0
    %v154 = vpop.f32.mrb[0].mxu0
    %v155 = vadd.f32 %v107, %v154
    %v156 = vpop.f32.mrb[0].mxu0
    %157 = vdwg.mxu0
    %v158 = vmax.f32 %v152, 0.0
    %v159 = vmax.f32 %v155, 0.0
    %161 = vset.pattern.permute.xlu0 0
    %162 = vperm.xlu0 %161, %v38
    %v163 = vpop.permute.xlu0 %162
    %166 = vset.pattern.permute.xlu0 0
    %167 = vperm.xlu0 %166, %v39
    %v168 = vpop.permute.xlu0 %167
    %v170 = vmul.f32 %v158, %v163
    %v171 = vmul.f32 %v159, %v168
    %v172 = vsel %vm57, %v170, 0.0
    %v173 = vsel %vm57, %v171, 0.0
    %v174 = vadd.f32 %v172, %v173
    %v175 = vrot.slane %v174, 4
    %v176 = vadd.f32 %v174, %v175
    %v177 = vrot.slane %v176, 2
    %v178 = vadd.f32 %v176, %v177
    %v179 = vrot.slane %v178, 1
    %v180 = vadd.f32 %v178, %v179
    %181 = vset.pattern.permute.xlu0 1
    %182 = vperm.xlu0 %181, %v38
    %v183 = vpop.permute.xlu0 %182
    %185 = vset.pattern.permute.xlu0 1
    %186 = vperm.xlu0 %185, %v39
    %v187 = vpop.permute.xlu0 %186
    %v189 = vmul.f32 %v158, %v183
    %v190 = vmul.f32 %v159, %v187
    %v191 = vsel %vm57, %v189, 0.0
    %v192 = vsel %vm57, %v190, 0.0
    %v193 = vadd.f32 %v191, %v192
    %v194 = vrot.slane %v193, 4
    %v195 = vadd.f32 %v193, %v194
    %v196 = vrot.slane %v195, 2
    %v197 = vadd.f32 %v195, %v196
    %v198 = vrot.slane %v197, 1
    %v199 = vadd.f32 %v197, %v198
    %v200 = vlaneseq
    %v201 = vshrl.u32 %v200, 7
    %vm202 = vcmp.eq.s32.totalorder %v201, 0
    %v203 = vsel %vm202, %v180, 0.0
    %v204 = vadd.f32 %v203, 0.0
    %vm205 = vcmp.eq.s32.totalorder %v201, 1
    %v206 = vsel %vm205, %v199, 0.0
    %v207 = vadd.f32 %v204, %v206
    %v208 = vpack.c.bf16 %v207, %v207
    %s209 = scalar_lea.vmem %s4, 16
    %v210 = vld [vmem:[%s209] sm:$0xf]
    %v211 = vld [vmem:[%s209 + $0x4] sm:$0xf]
    %v212 = vld [vmem:[%s209 + $0x8] sm:$0xf]
    %v213 = vld [vmem:[%s209 + $0xc] sm:$0xf]
    %v214 = vld [vmem:[%s6 + $0x3] sm:$0x1]
    %v215 = vlaneseq
    %v216 = vshrl.u32 %v215, 7
    %v217 = vsub.s32 0, %v216
    %v218 = vrot.slane %v214, %v217
    %v223 = vunpack.c.l.b16 %v210
    %v224 = vunpack.c.l.b16 %v211
    %v225 = vunpack.c.l.b16 %v212
    %v226 = vunpack.c.l.b16 %v213
    %v227 = vpack.c.b16 %v224, %v223
    %v228 = vpack.c.b16 %v226, %v225
    %v232 = vsel %vm57, %v208, 0
    %234 = vmatprep.subr.bf16.mxu0 0
    %235 = vmatpush1.bf16.msra.mxu0 %v227
    %236 = vmatprep.subr.bf16.mxu0 0
    %237 = vmatpush1.bf16.msra.mxu0 %v228
    %238 = vmatprep.subr.bf16.mxu0 0
    %239 = vmatpush1.bf16.msra.mxu0 0
    %240 = vmatprep.subr.bf16.mxu0 0
    %241 = vmatpush1.bf16.msra.mxu0 0
    %242 = vmatprep.subr.bf16.mxu0 0
    %243 = vmatpush1.bf16.msra.mxu0 0
    %244 = vmatprep.subr.bf16.mxu0 0
    %245 = vmatpush1.bf16.msra.mxu0 0
    %246 = vmatprep.subr.bf16.mxu0 0
    %247 = vmatpush1.bf16.msra.mxu0 0
    %248 = vmatprep.subr.bf16.mxu0 0
    %249 = vmatpush1.bf16.msra.mxu0 0
    %250 = vmatprep.subr.bf16.mxu0 0
    %251 = vmatpush1.bf16.msra.mxu0 0
    %252 = vmatprep.subr.bf16.mxu0 0
    %253 = vmatpush1.bf16.msra.mxu0 0
    %254 = vmatprep.subr.bf16.mxu0 0
    %255 = vmatpush1.bf16.msra.mxu0 0
    %256 = vmatprep.subr.bf16.mxu0 0
    %257 = vmatpush1.bf16.msra.mxu0 0
    %258 = vmatprep.subr.bf16.mxu0 0
    %259 = vmatpush1.bf16.msra.mxu0 0
    %260 = vmatprep.subr.bf16.mxu0 0
    %261 = vmatpush1.bf16.msra.mxu0 0
    %262 = vmatprep.subr.bf16.mxu0 0
    %263 = vmatpush1.bf16.msra.mxu0 0
    %264 = vmatprep.subr.bf16.mxu0 0
    %265 = vmatpush1.bf16.msra.mxu0 0
    %266 = vmatprep.mubr.bf16.mxu0 0
    %267 = vmatmul.mubr.bf16.gmra.mrb[0].mxu0 %v232
    %v268 = vpop.f32.mrb[0].mxu0
    %v269 = vadd.f32 %v218, %v268
    %v270 = vpop.f32.mrb[0].mxu0
    %v271 = vpop.f32.mrb[0].mxu0
    %v272 = vpop.f32.mrb[0].mxu0
    %273 = vdwg.mxu0
    %v274 = vmax.f32 %v269, 0.0
    %v275 = vpack.c.bf16 %v274, %v274
    %s276 = scalar_lea.vmem %s5, 32
    %v277 = vld [vmem:[%s276] sm:$0xf]
    %v278 = vld [vmem:[%s276 + $0x4] sm:$0xf]
    %v279 = vld [vmem:[%s276 + $0x8] sm:$0xf]
    %v280 = vld [vmem:[%s276 + $0xc] sm:$0xf]
    %v281 = vld [vmem:[%s276 + $0x10] sm:$0xf]
    %v282 = vld [vmem:[%s276 + $0x14] sm:$0xf]
    %v283 = vld [vmem:[%s276 + $0x18] sm:$0xf]
    %v284 = vld [vmem:[%s276 + $0x1c] sm:$0xf]
    %v285 = vld [vmem:[%s6 + $0x5] sm:$0x1]
    %v286 = vlaneseq
    %v287 = vshrl.u32 %v286, 7
    %v288 = vsub.s32 0, %v287
    %v289 = vrot.slane %v285, %v288
    %v298 = vunpack.c.l.b16 %v277
    %v299 = vunpack.c.l.b16 %v278
    %v300 = vunpack.c.l.b16 %v279
    %v301 = vunpack.c.l.b16 %v280
    %v302 = vunpack.c.l.b16 %v281
    %v303 = vunpack.c.l.b16 %v282
    %v304 = vunpack.c.l.b16 %v283
    %v305 = vunpack.c.l.b16 %v284
    %v306 = vpack.c.b16 %v299, %v298
    %v307 = vpack.c.b16 %v301, %v300
    %v308 = vpack.c.b16 %v303, %v302
    %v309 = vpack.c.b16 %v305, %v304
    %vm314 = vcmask 523264
    %v316 = vsel %vm314, %v275, 0
    %318 = vmatprep.subr.bf16.mxu0 0
    %319 = vmatpush1.bf16.msra.mxu0 %v306
    %320 = vmatprep.subr.bf16.mxu0 0
    %321 = vmatpush1.bf16.msra.mxu0 %v307
    %322 = vmatprep.subr.bf16.mxu0 0
    %323 = vmatpush1.bf16.msra.mxu0 %v308
    %324 = vmatprep.subr.bf16.mxu0 0
    %325 = vmatpush1.bf16.msra.mxu0 %v309
    %326 = vmatprep.subr.bf16.mxu0 0
    %327 = vmatpush1.bf16.msra.mxu0 0
    %328 = vmatprep.subr.bf16.mxu0 0
    %329 = vmatpush1.bf16.msra.mxu0 0
    %330 = vmatprep.subr.bf16.mxu0 0
    %331 = vmatpush1.bf16.msra.mxu0 0
    %332 = vmatprep.subr.bf16.mxu0 0
    %333 = vmatpush1.bf16.msra.mxu0 0
    %334 = vmatprep.subr.bf16.mxu0 0
    %335 = vmatpush1.bf16.msra.mxu0 0
    %336 = vmatprep.subr.bf16.mxu0 0
    %337 = vmatpush1.bf16.msra.mxu0 0
    %338 = vmatprep.subr.bf16.mxu0 0
    %339 = vmatpush1.bf16.msra.mxu0 0
    %340 = vmatprep.subr.bf16.mxu0 0
    %341 = vmatpush1.bf16.msra.mxu0 0
    %342 = vmatprep.subr.bf16.mxu0 0
    %343 = vmatpush1.bf16.msra.mxu0 0
    %344 = vmatprep.subr.bf16.mxu0 0
    %345 = vmatpush1.bf16.msra.mxu0 0
    %346 = vmatprep.subr.bf16.mxu0 0
    %347 = vmatpush1.bf16.msra.mxu0 0
    %348 = vmatprep.subr.bf16.mxu0 0
    %349 = vmatpush1.bf16.msra.mxu0 0
    %350 = vmatprep.mubr.bf16.mxu0 0
    %351 = vmatmul.mubr.bf16.gmra.mrb[0].mxu0 %v316
    %v352 = vpop.f32.mrb[0].mxu0
    %v353 = vadd.f32 %v289, %v352
    %v354 = vpop.f32.mrb[0].mxu0
    %v355 = vpop.f32.mrb[0].mxu0
    %v356 = vpop.f32.mrb[0].mxu0
    %357 = vdwg.mxu0
    %v358 = vmax.f32 %v353, 0.0
    %v359 = vpack.c.bf16 %v159, %v158
    %s360 = scalar_lea.vmem %s3, 16
    %v361 = vld [vmem:[%s360] sm:$0xf]
    %v362 = vld [vmem:[%s360 + $0x4] sm:$0xf]
    %v363 = vld [vmem:[%s360 + $0x8] sm:$0xf]
    %v364 = vld [vmem:[%s360 + $0xc] sm:$0xf]
    %v369 = vunpack.c.l.b16 %v361
    %v370 = vunpack.c.l.b16 %v362
    %v371 = vunpack.c.l.b16 %v363
    %v372 = vunpack.c.l.b16 %v364
    %v373 = vpack.c.b16 %v370, %v369
    %v374 = vpack.c.b16 %v372, %v371
    %v378 = vsel %vm57, %v359, 0
    %380 = vmatprep.subr.bf16.mxu0 0
    %381 = vmatpush1.bf16.msra.mxu0 %v373
    %382 = vmatprep.subr.bf16.mxu0 0
    %383 = vmatpush1.bf16.msra.mxu0 %v374
    %384 = vmatprep.subr.bf16.mxu0 0
    %385 = vmatpush1.bf16.msra.mxu0 0
    %386 = vmatprep.subr.bf16.mxu0 0
    %387 = vmatpush1.bf16.msra.mxu0 0
    %388 = vmatprep.subr.bf16.mxu0 0
    %389 = vmatpush1.bf16.msra.mxu0 0
    %390 = vmatprep.subr.bf16.mxu0 0
    %391 = vmatpush1.bf16.msra.mxu0 0
    %392 = vmatprep.subr.bf16.mxu0 0
    %393 = vmatpush1.bf16.msra.mxu0 0
    %394 = vmatprep.subr.bf16.mxu0 0
    %395 = vmatpush1.bf16.msra.mxu0 0
    %396 = vmatprep.subr.bf16.mxu0 0
    %397 = vmatpush1.bf16.msra.mxu0 0
    %398 = vmatprep.subr.bf16.mxu0 0
    %399 = vmatpush1.bf16.msra.mxu0 0
    %400 = vmatprep.subr.bf16.mxu0 0
    %401 = vmatpush1.bf16.msra.mxu0 0
    %402 = vmatprep.subr.bf16.mxu0 0
    %403 = vmatpush1.bf16.msra.mxu0 0
    %404 = vmatprep.subr.bf16.mxu0 0
    %405 = vmatpush1.bf16.msra.mxu0 0
    %406 = vmatprep.subr.bf16.mxu0 0
    %407 = vmatpush1.bf16.msra.mxu0 0
    %408 = vmatprep.subr.bf16.mxu0 0
    %409 = vmatpush1.bf16.msra.mxu0 0
    %410 = vmatprep.subr.bf16.mxu0 0
    %411 = vmatpush1.bf16.msra.mxu0 0
    %412 = vmatprep.mubr.bf16.mxu0 0
    %413 = vmatmul.mubr.bf16.gmra.mrb[0].mxu0 %v378
    %v414 = vpop.f32.mrb[0].mxu0
    %v415 = vadd.f32 0.0, %v414
    %v416 = vpop.f32.mrb[0].mxu0
    %v417 = vpop.f32.mrb[0].mxu0
    %v418 = vadd.f32 0.0, %v417
    %v419 = vpop.f32.mrb[0].mxu0
    %420 = vdwg.mxu0
    %v421 = vpack.c.bf16 %v418, %v415
    %v422 = vld [vmem:[%s6 + $0x1] sm:$0x1]
    %v423 = vlaneseq
    %v424 = vshrl.u32 %v423, 7
    %v425 = vsub.s32 0, %v424
    %v426 = vrot.slane %v422, %v425
    %427 = vmatprep.subr.bf16.mxu0 0
    %428 = vmatpush1.bf16.msra.mxu0 %v421
    %429 = vmatprep.subr.bf16.mxu0 0
    %430 = vmatpush1.bf16.msra.mxu0 0
    %431 = vmatprep.subr.bf16.mxu0 0
    %432 = vmatpush1.bf16.msra.mxu0 0
    %433 = vmatprep.subr.bf16.mxu0 0
    %434 = vmatpush1.bf16.msra.mxu0 0
    %435 = vmatprep.subr.bf16.mxu0 0
    %436 = vmatpush1.bf16.msra.mxu0 0
    %437 = vmatprep.subr.bf16.mxu0 0
    %438 = vmatpush1.bf16.msra.mxu0 0
    %439 = vmatprep.subr.bf16.mxu0 0
    %440 = vmatpush1.bf16.msra.mxu0 0
    %441 = vmatprep.subr.bf16.mxu0 0
    %442 = vmatpush1.bf16.msra.mxu0 0
    %443 = vmatprep.subr.bf16.mxu0 0
    %444 = vmatpush1.bf16.msra.mxu0 0
    %445 = vmatprep.subr.bf16.mxu0 0
    %446 = vmatpush1.bf16.msra.mxu0 0
    %447 = vmatprep.subr.bf16.mxu0 0
    %448 = vmatpush1.bf16.msra.mxu0 0
    %449 = vmatprep.subr.bf16.mxu0 0
    %450 = vmatpush1.bf16.msra.mxu0 0
    %451 = vmatprep.subr.bf16.mxu0 0
    %452 = vmatpush1.bf16.msra.mxu0 0
    %453 = vmatprep.subr.bf16.mxu0 0
    %454 = vmatpush1.bf16.msra.mxu0 0
    %455 = vmatprep.subr.bf16.mxu0 0
    %456 = vmatpush1.bf16.msra.mxu0 0
    %457 = vmatprep.subr.bf16.mxu0 0
    %458 = vmatpush1.bf16.msra.mxu0 0
    %459 = vmatprep.mubr.bf16.mxu0 0
    %460 = vmatmul.mubr.bf16.gmra.mrb[0].mxu0 %v115
    %v461 = vpop.f32.mrb[0].mxu0
    %v462 = vadd.f32 %v426, %v461
    %v463 = vpop.f32.mrb[0].mxu0
    %v464 = vpop.f32.mrb[0].mxu0
    %v465 = vadd.f32 %v426, %v464
    %v466 = vpop.f32.mrb[0].mxu0
    %467 = vdwg.mxu0
    %v468 = vmax.f32 %v462, 0.0
    %v469 = vmax.f32 %v465, 0.0
    %v470 = vlaneseq
    %v471 = vshrl.u32 %v470, 7
    %v472 = vsub.s32 0, %v471
    %v473 = vrot.slane %v358, %v472
    %v474 = vmul.f32 %v163, %v473
    %v475 = vmul.f32 %v168, %v473
    %v476 = vlaneseq
    %v477 = vshrl.u32 %v476, 7
    %v478 = vsub.s32 1, %v477
    %v479 = vrot.slane %v358, %v478
    %v480 = vmul.f32 %v183, %v479
    %v481 = vmul.f32 %v187, %v479
    %v482 = vadd.f32 %v474, %v480
    %v483 = vadd.f32 %v475, %v481
    %v484 = vadd.f32 %v468, %v482
    %v485 = vadd.f32 %v469, %v483
    %486 = vset.pattern.permute.xlu0 2
    %487 = vperm.xlu0 %486, %v38
    %v488 = vpop.permute.xlu0 %487
    %490 = vset.pattern.permute.xlu0 2
    %491 = vperm.xlu0 %490, %v39
    %v492 = vpop.permute.xlu0 %491
    %v494 = vmul.f32 %v484, %v488
    %v495 = vmul.f32 %v485, %v492
    %v496 = vsel %vm57, %v494, 0.0
    %v497 = vsel %vm57, %v495, 0.0
    %v498 = vadd.f32 %v496, %v497
    %v499 = vrot.slane %v498, 4
    %v500 = vadd.f32 %v498, %v499
    %v501 = vrot.slane %v500, 2
    %v502 = vadd.f32 %v500, %v501
    %v503 = vrot.slane %v502, 1
    %v504 = vadd.f32 %v502, %v503
    %505 = vset.pattern.permute.xlu0 3
    %506 = vperm.xlu0 %505, %v38
    %v507 = vpop.permute.xlu0 %506
    %509 = vset.pattern.permute.xlu0 3
    %510 = vperm.xlu0 %509, %v39
    %v511 = vpop.permute.xlu0 %510
    %v513 = vmul.f32 %v484, %v507
    %v514 = vmul.f32 %v485, %v511
    %v515 = vsel %vm57, %v513, 0.0
    %v516 = vsel %vm57, %v514, 0.0
    %v517 = vadd.f32 %v515, %v516
    %v518 = vrot.slane %v517, 4
    %v519 = vadd.f32 %v517, %v518
    %v520 = vrot.slane %v519, 2
    %v521 = vadd.f32 %v519, %v520
    %v522 = vrot.slane %v521, 1
    %v523 = vadd.f32 %v521, %v522
    %v524 = vsel %vm202, %v504, 0.0
    %v525 = vadd.f32 %v524, 0.0
    %v526 = vsel %vm205, %v523, 0.0
    %v527 = vadd.f32 %v525, %v526
    %v528 = vld [vmem:[%s7] sm:$0xff]
    %v529 = vld [vmem:[%s7 + $0x8] sm:$0xff]
    %v530 = vld [vmem:[%s7 + $0x10] sm:$0xff]
    %v531 = vld [vmem:[%s7 + $0x18] sm:$0xff]
    %v532 = vld [vmem:[%s8] sm:$0x3]
    %v534 = vsel %vm57, %v527, 0
    %536 = vmatprep.subr.mxu0 0.0
    %537 = vmatpush1.msra.mxu0 %v528
    %538 = vmatprep.subr.mxu0 0.0
    %539 = vmatpush1.msra.mxu0 %v529
    %540 = vmatprep.subr.mxu0 0.0
    %541 = vmatpush1.msra.mxu0 %v530
    %542 = vmatprep.subr.mxu0 0.0
    %543 = vmatpush1.msra.mxu0 %v531
    %544 = vmatprep.subr.mxu0 0.0
    %545 = vmatpush1.msra.mxu0 0.0
    %546 = vmatprep.subr.mxu0 0.0
    %547 = vmatpush1.msra.mxu0 0.0
    %548 = vmatprep.subr.mxu0 0.0
    %549 = vmatpush1.msra.mxu0 0.0
    %550 = vmatprep.subr.mxu0 0.0
    %551 = vmatpush1.msra.mxu0 0.0
    %552 = vmatprep.subr.mxu0 0.0
    %553 = vmatpush1.msra.mxu0 0.0
    %554 = vmatprep.subr.mxu0 0.0
    %555 = vmatpush1.msra.mxu0 0.0
    %556 = vmatprep.subr.mxu0 0.0
    %557 = vmatpush1.msra.mxu0 0.0
    %558 = vmatprep.subr.mxu0 0.0
    %559 = vmatpush1.msra.mxu0 0.0
    %560 = vmatprep.subr.mxu0 0.0
    %561 = vmatpush1.msra.mxu0 0.0
    %562 = vmatprep.subr.mxu0 0.0
    %563 = vmatpush1.msra.mxu0 0.0
    %564 = vmatprep.subr.mxu0 0.0
    %565 = vmatpush1.msra.mxu0 0.0
    %566 = vmatprep.subr.mxu0 0.0
    %567 = vmatpush1.msra.mxu0 0.0
    %568 = vmatprep.subr.mxu0 0.0
    %569 = vmatpush1.msra.mxu0 0.0
    %570 = vmatprep.subr.mxu0 0.0
    %571 = vmatpush1.msra.mxu0 0.0
    %572 = vmatprep.subr.mxu0 0.0
    %573 = vmatpush1.msra.mxu0 0.0
    %574 = vmatprep.subr.mxu0 0.0
    %575 = vmatpush1.msra.mxu0 0.0
    %576 = vmatprep.subr.mxu0 0.0
    %577 = vmatpush1.msra.mxu0 0.0
    %578 = vmatprep.subr.mxu0 0.0
    %579 = vmatpush1.msra.mxu0 0.0
    %580 = vmatprep.subr.mxu0 0.0
    %581 = vmatpush1.msra.mxu0 0.0
    %582 = vmatprep.subr.mxu0 0.0
    %583 = vmatpush1.msra.mxu0 0.0
    %584 = vmatprep.subr.mxu0 0.0
    %585 = vmatpush1.msra.mxu0 0.0
    %586 = vmatprep.subr.mxu0 0.0
    %587 = vmatpush1.msra.mxu0 0.0
    %588 = vmatprep.subr.mxu0 0.0
    %589 = vmatpush1.msra.mxu0 0.0
    %590 = vmatprep.subr.mxu0 0.0
    %591 = vmatpush1.msra.mxu0 0.0
    %592 = vmatprep.subr.mxu0 0.0
    %593 = vmatpush1.msra.mxu0 0.0
    %594 = vmatprep.subr.mxu0 0.0
    %595 = vmatpush1.msra.mxu0 0.0
    %596 = vmatprep.subr.mxu0 0.0
    %597 = vmatpush1.msra.mxu0 0.0
    %598 = vmatprep.subr.mxu0 0.0
    %599 = vmatpush1.msra.mxu0 0.0
    %600 = vmatprep.mubr.f32.mxu0 0.0
    %601 = vmatmul.mubr.f32.gmra.mrb[0].mxu0 %v534
    %v602 = vpop.f32.mrb[0].mxu0
    %v603 = vadd.f32 %v532, %v602
    %v604 = vpop.f32.mrb[0].mxu0
    %605 = vdwg.mxu0
    %vm606 = vcmask 123904
    %607 = vst.msk [vmem:[#allocation2] sm:$0x3] %vm606, %v603
    // Predicated region
    $region38: #{network_gnn_forward.1} parent=1 // pred_check
      _
    $region39: #{network_gnn_forward.1} parent=1 // pred_check_branch
      %609 = sbr.rel (0) target = $region41
    $region40: #{network_gnn_forward.1} parent=1 // pred_region
      %s611 = ssub.s32 32, 32
      %612 = vsyncadd [#allocation3], %s611
      %s614 = sshll.u32 [#allocation2], 4
      %s615 = int_to_ptr.vmem [resolvable:$true] %s614
      %617 = dma.vmem_to_hbm [thread:$0]  %s615, 32, %s9, [#allocation3]
    $region41: #{network_gnn_forward.1} parent=1 // pred_fallthru
      _
    // Predicated region
    $region42: #{network_gnn_forward.1} parent=1 // pred_check
      _
    $region43: #{network_gnn_forward.1} parent=1 // pred_check_branch
      %619 = sbr.rel (0) target = $region45
    $region44: #{network_gnn_forward.1} parent=1 // pred_region
      %620 = dma.done [#allocation3], 32
    $region45: #{network_gnn_forward.1} parent=1 // pred_fallthru
      _
    %621 = vsyncpa [#allocation3], 1

</llo_original>
